<compile_context>
chip_gen: v6e
topology: v6e:2x2x1
jax: 0.10.0
libtpu: 0.0.40
codegen_flags: <defaults>
</compile_context>

<pallas_src>
import functools
import math

import jax
import jax.numpy as jnp
from jax.experimental import pallas as pl
from jax.experimental.pallas import tpu as pltpu


def _round_up(x, m):
    return ((x + m - 1) // m) * m


def policy_kernel(x_ref, w1_ref, b1_ref, w2_ref, b2_ref, w3_ref, b3_ref, o_ref,
                  *, max_action):
    # One batch tile per grid step; bf16 weights are resident (full-array blocks).
    # Matmul operands are bf16 (MXU fast path); accumulation is f32.
    x = x_ref[...].astype(jnp.bfloat16)

    h1 = jnp.dot(x, w1_ref[...], preferred_element_type=jnp.float32) + b1_ref[...]
    h1 = jnp.maximum(h1, 0.0).astype(jnp.bfloat16)        # ReLU in f32, bf16 to next MXU

    h2 = jnp.dot(h1, w2_ref[...], preferred_element_type=jnp.float32) + b2_ref[...]
    h2 = jnp.maximum(h2, 0.0).astype(jnp.bfloat16)        # ReLU

    mu = jnp.dot(h2, w3_ref[...], preferred_element_type=jnp.float32) + b3_ref[...]
    o_ref[...] = (jnp.tanh(mu) * max_action).astype(o_ref.dtype)   # Policy head


def policy_forward(x, params, max_action, *, batch_tile=None):
    """Fused Policy forward: tanh(MLP(x)) * max_action.

    params: dict of W1,b1,W2,b2,W3,b3 with Wi shaped (in_features, out_features)
    (bf16 or f32; cast to bf16 here), bi shaped (1, out_features) f32.
    """
    B, in_dim = x.shape
    hid = params["W1"].shape[1]
    out_dim = params["W3"].shape[1]

    # --- lane-dense output: pad out_dim to a multiple of 128 (zero columns). ---
    out_p = _round_up(out_dim, 128)
    W1 = params["W1"].astype(jnp.bfloat16)
    W2 = params["W2"].astype(jnp.bfloat16)
    W3 = params["W3"].astype(jnp.bfloat16)
    b1 = params["b1"].astype(jnp.float32)
    b2 = params["b2"].astype(jnp.float32)
    b3 = params["b3"].astype(jnp.float32)
    if out_p != out_dim:
        W3 = jnp.pad(W3, ((0, 0), (0, out_p - out_dim)))
        b3 = jnp.pad(b3, ((0, 0), (0, out_p - out_dim)))

    # --- batch tiling: multiple-of-16 rows, ragged batch handled by padding. ---
    tb = batch_tile if batch_tile is not None else min(512, _round_up(B, 16))
    tb = max(16, _round_up(tb, 16))
    B_pad = _round_up(B, tb)
    xp = x if B_pad == B else jnp.pad(x, ((0, B_pad - B), (0, 0)))
    grid = (B_pad // tb,)

    # --- VMEM budget: 2x (double-buffered) tiles + resident weights + scratch. ---
    w_bytes = (in_dim * hid + hid * hid + hid * out_p) * 2          # bf16 weights
    b_bytes = (hid + hid + out_p) * 4                               # f32 biases
    x_tile_bytes = tb * in_dim * xp.dtype.itemsize
    o_tile_bytes = tb * out_p * 4
    interm_bytes = 2 * tb * hid * 4                                 # h1/h2 f32 temporaries
    vmem_limit = 2 * (w_bytes + b_bytes + x_tile_bytes + o_tile_bytes) \
        + interm_bytes + (4 << 20)
    vmem_limit = int(min(vmem_limit, 64 << 20))                     # fits v7x's 64 MiB

    # --- scheduler hint ---
    flops = 2 * B_pad * (in_dim * hid + hid * hid + hid * out_p)
    transcendentals = B_pad * out_p                                 # tanh
    bytes_accessed = (xp.size * xp.dtype.itemsize + w_bytes + b_bytes
                      + B_pad * out_p * 4)

    def whole(shape):
        # Full-array block, identical at every grid step (weights stay resident).
        return pl.BlockSpec(shape, lambda i: (0, 0))

    out = pl.pallas_call(
        functools.partial(policy_kernel, max_action=float(max_action)),
        out_shape=jax.ShapeDtypeStruct((B_pad, out_p), x.dtype),
        grid_spec=pltpu.PrefetchScalarGridSpec(
            num_scalar_prefetch=0,
            grid=grid,
            in_specs=[
                pl.BlockSpec((tb, in_dim), lambda i: (i, 0)),   # x batch tile
                whole((in_dim, hid)),                           # W1 (bf16)
                whole((1, hid)),                                # b1 (f32)
                whole((hid, hid)),                              # W2 (bf16)
                whole((1, hid)),                                # b2 (f32)
                whole((hid, out_p)),                            # W3 (bf16, lane-padded)
                whole((1, out_p)),                              # b3 (f32, lane-padded)
            ],
            out_specs=pl.BlockSpec((tb, out_p), lambda i: (i, 0)),
        ),
        compiler_params=pltpu.CompilerParams(
            dimension_semantics=("parallel",),
            vmem_limit_bytes=vmem_limit,
        ),
        cost_estimate=pl.CostEstimate(
            flops=flops,
            transcendentals=transcendentals,
            bytes_accessed=bytes_accessed,
        ),
    )(xp, W1, b1, W2, b2, W3, b3)

    # Strip batch padding and output lane padding.
    return out[:B, :out_dim]


def init_policy_params(key, state_dim, action_dim, hidden_size):
    """Deterministic init mimicking PyTorch nn.Linear default:
    U(-1/sqrt(fan_in), 1/sqrt(fan_in)) for both weight and bias.
    Weights stored as (in, out) in bf16; biases (1, out) in f32."""
    def linear_init(k, fan_in, fan_out):
        kw, kb = jax.random.split(k)
        bound = 1.0 / math.sqrt(fan_in)
        W = jax.random.uniform(kw, (fan_in, fan_out), jnp.float32, -bound, bound)
        b = jax.random.uniform(kb, (1, fan_out), jnp.float32, -bound, bound)
        return W.astype(jnp.bfloat16), b

    k1, k2, k3 = jax.random.split(key, 3)
    W1, b1 = linear_init(k1, state_dim, hidden_size)
    W2, b2 = linear_init(k2, hidden_size, hidden_size)
    W3, b3 = linear_init(k3, hidden_size, action_dim)
    return {"W1": W1, "b1": b1, "W2": W2, "b2": b2, "W3": W3, "b3": b3}


def policy_reference(x, p, max_action):
    """Pure-JAX reference with the same bf16-operand / f32-accumulate numerics."""
    W1 = p["W1"].astype(jnp.float32)
    W2 = p["W2"].astype(jnp.float32)
    W3 = p["W3"].astype(jnp.float32)
    xb = x.astype(jnp.bfloat16).astype(jnp.float32)
    h1 = jnp.maximum(xb @ W1 + p["b1"], 0.0)
    h1b = h1.astype(jnp.bfloat16).astype(jnp.float32)
    h2 = jnp.maximum(h1b @ W2 + p["b2"], 0.0)
    h2b = h2.astype(jnp.bfloat16).astype(jnp.float32)
    mu = h2b @ W3 + p["b3"]
    return jnp.tanh(mu) * max_action


if __name__ == "__main__":
    key = jax.random.PRNGKey(0)
    k_param, k_x = jax.random.split(key)

    # Small shapes consistent with Policy: hidden_size keeps the module default
    # (256, already a multiple of 128); action_dim=4 gets lane-padded to 128
    # inside the wrapper. Ragged batch (40) with batch_tile=16 exercises the
    # padding path and a multi-step (parallel) grid.
    batch, state_dim, action_dim, hidden_size = 40, 16, 4, 256
    max_action = 2.0

    params = init_policy_params(k_param, state_dim, action_dim, hidden_size)
    x = jax.random.normal(k_x, (batch, state_dim), jnp.float32)

    out = policy_forward(x, params, max_action, batch_tile=16)
    out = jax.block_until_ready(out)

    ref = policy_reference(x, params, max_action)
    assert out.shape == (batch, action_dim)
    assert bool(jnp.all(jnp.abs(out) <= max_action + 1e-4)), "tanh bound violated"
    assert jnp.allclose(out, ref, atol=1e-3, rtol=1e-3), "mismatch vs JAX reference"

    print("KERNEL_OK")
</pallas_src>

<mosaic_0001>
module attributes {stable_mosaic.version = 11 : i64} {
  func.func @policy_kernel(%arg0: i32, %arg1: memref<16x16xf32, #tpu.memory_space<vmem>>, %arg2: memref<16x256xbf16, #tpu.memory_space<vmem>>, %arg3: memref<1x256xf32, #tpu.memory_space<vmem>>, %arg4: memref<256x256xbf16, #tpu.memory_space<vmem>>, %arg5: memref<1x256xf32, #tpu.memory_space<vmem>>, %arg6: memref<256x128xbf16, #tpu.memory_space<vmem>>, %arg7: memref<1x128xf32, #tpu.memory_space<vmem>>, %arg8: memref<16x128xf32, #tpu.memory_space<vmem>>) attributes {dimension_semantics = [#tpu.dimension_semantics<parallel>], iteration_bounds = array<i64: 3>, scalar_prefetch = 0 : i64, scratch_operands = 0 : i64, tpu.core_type = #tpu.core_type<tc>, window_params = [{transform_indices = @transform_0, window_bounds = array<i64: 16, 16>}, {pipeline_mode = #tpu.pipeline_mode<synchronous>, transform_indices = @transform_1, window_bounds = array<i64: 16, 256>}, {pipeline_mode = #tpu.pipeline_mode<synchronous>, transform_indices = @transform_2, window_bounds = array<i64: 1, 256>}, {pipeline_mode = #tpu.pipeline_mode<synchronous>, transform_indices = @transform_3, window_bounds = array<i64: 256, 256>}, {pipeline_mode = #tpu.pipeline_mode<synchronous>, transform_indices = @transform_4, window_bounds = array<i64: 1, 256>}, {pipeline_mode = #tpu.pipeline_mode<synchronous>, transform_indices = @transform_5, window_bounds = array<i64: 256, 128>}, {pipeline_mode = #tpu.pipeline_mode<synchronous>, transform_indices = @transform_6, window_bounds = array<i64: 1, 128>}, {transform_indices = @transform_7, window_bounds = array<i64: 16, 128>}]} {
    %c0 = arith.constant 0 : index
    %c0_0 = arith.constant 0 : index
    %0 = vector.load %arg1[%c0, %c0_0] : memref<16x16xf32, #tpu.memory_space<vmem>>, vector<16x16xf32>
    %1 = arith.truncf %0 : vector<16x16xf32> to vector<16x16xbf16>
    %c0_1 = arith.constant 0 : index
    %c0_2 = arith.constant 0 : index
    %2 = vector.load %arg2[%c0_1, %c0_2] : memref<16x256xbf16, #tpu.memory_space<vmem>>, vector<16x256xbf16>
    %cst = arith.constant dense<0.000000e+00> : vector<16x256xf32>
    %3 = tpu.matmul %1, %2, %cst {dimension_numbers = #tpu.dot_dimension_numbers<[1], [0], [0], [1], [0, 0, 1, 1], [], []>} : vector<16x16xbf16>, vector<16x256xbf16>, vector<16x256xf32> -> vector<16x256xf32>
    %c0_3 = arith.constant 0 : index
    %c0_4 = arith.constant 0 : index
    %4 = vector.load %arg3[%c0_3, %c0_4] : memref<1x256xf32, #tpu.memory_space<vmem>>, vector<1x256xf32>
    %5 = vector.broadcast %4 : vector<1x256xf32> to vector<16x256xf32>
    %6 = arith.addf %3, %5 : vector<16x256xf32>
    %cst_5 = arith.constant 0.000000e+00 : f32
    %7 = vector.broadcast %cst_5 : f32 to vector<16x256xf32>
    %8 = arith.maximumf %6, %7 : vector<16x256xf32>
    %9 = arith.truncf %8 : vector<16x256xf32> to vector<16x256xbf16>
    %c0_6 = arith.constant 0 : index
    %c0_7 = arith.constant 0 : index
    %10 = vector.load %arg4[%c0_6, %c0_7] : memref<256x256xbf16, #tpu.memory_space<vmem>>, vector<256x256xbf16>
    %cst_8 = arith.constant dense<0.000000e+00> : vector<16x256xf32>
    %11 = tpu.matmul %9, %10, %cst_8 {dimension_numbers = #tpu.dot_dimension_numbers<[1], [0], [0], [1], [0, 0, 1, 1], [], []>} : vector<16x256xbf16>, vector<256x256xbf16>, vector<16x256xf32> -> vector<16x256xf32>
    %c0_9 = arith.constant 0 : index
    %c0_10 = arith.constant 0 : index
    %12 = vector.load %arg5[%c0_9, %c0_10] : memref<1x256xf32, #tpu.memory_space<vmem>>, vector<1x256xf32>
    %13 = vector.broadcast %12 : vector<1x256xf32> to vector<16x256xf32>
    %14 = arith.addf %11, %13 : vector<16x256xf32>
    %cst_11 = arith.constant 0.000000e+00 : f32
    %15 = vector.broadcast %cst_11 : f32 to vector<16x256xf32>
    %16 = arith.maximumf %14, %15 : vector<16x256xf32>
    %17 = arith.truncf %16 : vector<16x256xf32> to vector<16x256xbf16>
    %c0_12 = arith.constant 0 : index
    %c0_13 = arith.constant 0 : index
    %18 = vector.load %arg6[%c0_12, %c0_13] : memref<256x128xbf16, #tpu.memory_space<vmem>>, vector<256x128xbf16>
    %cst_14 = arith.constant dense<0.000000e+00> : vector<16x128xf32>
    %19 = tpu.matmul %17, %18, %cst_14 {dimension_numbers = #tpu.dot_dimension_numbers<[1], [0], [0], [1], [0, 0, 1, 1], [], []>} : vector<16x256xbf16>, vector<256x128xbf16>, vector<16x128xf32> -> vector<16x128xf32>
    %c0_15 = arith.constant 0 : index
    %c0_16 = arith.constant 0 : index
    %20 = vector.load %arg7[%c0_15, %c0_16] : memref<1x128xf32, #tpu.memory_space<vmem>>, vector<1x128xf32>
    %21 = vector.broadcast %20 : vector<1x128xf32> to vector<16x128xf32>
    %22 = arith.addf %19, %21 : vector<16x128xf32>
    %23 = math.tanh %22 : vector<16x128xf32>
    %cst_17 = arith.constant 2.000000e+00 : f32
    %24 = vector.broadcast %cst_17 : f32 to vector<16x128xf32>
    %25 = arith.mulf %23, %24 : vector<16x128xf32>
    %c0_18 = arith.constant 0 : index
    %c0_19 = arith.constant 0 : index
    %26 = vector.load %arg8[%c0_18, %c0_19] : memref<16x128xf32, #tpu.memory_space<vmem>>, vector<16x128xf32>
    tpu.vector_store %arg8[%c0_18, %c0_19], %25 {strides = array<i32>} : memref<16x128xf32, #tpu.memory_space<vmem>>, vector<16x128xf32>,
    return
  }
  func.func @transform_0(%arg0: i32) -> (i32, i32) {
    %c0_i32 = arith.constant 0 : i32
    %c0_i32_0 = arith.constant 0 : i32
    return %arg0, %c0_i32 : i32, i32
  }
  func.func @transform_1(%arg0: i32) -> (i32, i32) {
    %c0_i32 = arith.constant 0 : i32
    %c0_i32_0 = arith.constant 0 : i32
    %c0_i32_1 = arith.constant 0 : i32
    return %c0_i32, %c0_i32_0 : i32, i32
  }
  func.func @transform_2(%arg0: i32) -> (i32, i32) {
    %c0_i32 = arith.constant 0 : i32
    %c0_i32_0 = arith.constant 0 : i32
    %c0_i32_1 = arith.constant 0 : i32
    return %c0_i32, %c0_i32_0 : i32, i32
  }
  func.func @transform_3(%arg0: i32) -> (i32, i32) {
    %c0_i32 = arith.constant 0 : i32
    %c0_i32_0 = arith.constant 0 : i32
    %c0_i32_1 = arith.constant 0 : i32
    return %c0_i32, %c0_i32_0 : i32, i32
  }
  func.func @transform_4(%arg0: i32) -> (i32, i32) {
    %c0_i32 = arith.constant 0 : i32
    %c0_i32_0 = arith.constant 0 : i32
    %c0_i32_1 = arith.constant 0 : i32
    return %c0_i32, %c0_i32_0 : i32, i32
  }
  func.func @transform_5(%arg0: i32) -> (i32, i32) {
    %c0_i32 = arith.constant 0 : i32
    %c0_i32_0 = arith.constant 0 : i32
    %c0_i32_1 = arith.constant 0 : i32
    return %c0_i32, %c0_i32_0 : i32, i32
  }
  func.func @transform_6(%arg0: i32) -> (i32, i32) {
    %c0_i32 = arith.constant 0 : i32
    %c0_i32_0 = arith.constant 0 : i32
    %c0_i32_1 = arith.constant 0 : i32
    return %c0_i32, %c0_i32_0 : i32, i32
  }
  func.func @transform_7(%arg0: i32) -> (i32, i32) {
    %c0_i32 = arith.constant 0 : i32
    %c0_i32_0 = arith.constant 0 : i32
    return %arg0, %c0_i32 : i32, i32
  }
}

</mosaic_0001>

<llo_original>
// kernel: tpu_custom_call.1
$region0: #{tpu_custom_call.1}
  #allocation0 [shape = 'u32[]', space=smem, size = 0x4, offset = 0x4, fixed_abs, tag = 'smem constant byte address 0x4 - core index']
  #allocation1 [shape = 'u32[144,128]{1,0:T(1,128)}', space=vmem, size = 0x12000, scoped, tag = 'internal scratch']
  %s0 = inlined_call_operand.vmem [shape: f32[48,16], index: 0, kind: input, shape index: {}]
  %s1 = inlined_call_operand.vmem [shape: bf16[16,256], index: 1, kind: input, shape index: {}]
  %s2 = inlined_call_operand.vmem [shape: f32[1,256], index: 2, kind: input, shape index: {}]
  %s3 = inlined_call_operand.hbm [shape: bf16[256,256], index: 3, kind: input, shape index: {}]
  %s4 = inlined_call_operand.vmem [shape: f32[1,256], index: 4, kind: input, shape index: {}]
  %s5 = inlined_call_operand.hbm [shape: bf16[256,128], index: 5, kind: input, shape index: {}]
  %s6 = inlined_call_operand.vmem [shape: f32[1,128], index: 6, kind: input, shape index: {}]
  %s7 = inlined_call_operand.hbm [shape: f32[48,128], index: 7, kind: output, shape index: {}]
  %s8 = sld [smem:[#allocation0]]
  $region69: #{tpu_custom_call.1} parent=0
    _
  %s10 = ssub.s32 1, %s8
  %s11 = scalar_select 0, %s10, %s8
  $region1: #{tpu_custom_call.1} parent=0
    #allocation2 [shape = 'u8[131072]{0}', space=vmem, size = 0x20000, scoped, tag = 'input window, operand 3, single buffered']
    #allocation3 [shape = 's32[2]{0}', space=sflag, size = 0x8, scoped, tag = 'scoped memory for tpu_custom_call.1']
    #allocation4 [shape = 's32[2]{0}', space=sflag, size = 0x8, scoped, tag = 'scoped memory for tpu_custom_call.1']
    #allocation5 [shape = 'u8[65536]{0}', space=vmem, size = 0x10000, scoped, tag = 'input window, operand 5, single buffered']
    #allocation6 [shape = 's32[1]{0}', space=sflag, size = 0x4, scoped, tag = 'scoped memory for tpu_custom_call.1']
    #allocation7 [shape = 'u8[16384]{0}', space=vmem, size = 0x4000, scoped, tag = 'output window, operand 0']
    %12 = vsyncpa [#allocation3], 0
    %13 = vsyncpa [#allocation6], 0
    %14 = vsyncpa [#allocation4], 0
    %s15 = scalar_lea.sflag [#allocation4], 1
    %16 = vsyncpa %s15, 0
    loop: start=0, step=1, limit=5
    $region2: #{tpu_custom_call.1} parent=1 // loop_pre_header
      _
    $region3: #{tpu_custom_call.1} parent=1 // loop_header
      %s18 = sphi 0, %s22
      %p19 = scmp.ge.s32.totalorder %s18, 5
      %s28 = sphi 0, %s30
      %s31 = sphi 0, %s28
      %s32 = sphi 0, %s31
      %s48 = sphi 0, %s32
      %s52 = sphi 0, %s52
      %s54 = sphi 0, %s52
      %s55 = sphi 0, %s54
      %s69 = sphi 0, %s55
      %s73 = sphi 0, %s73
      %s75 = sphi 0, %s73
      %s76 = sphi 0, %s75
      %s90 = sphi 0, %s76
      %s94 = sphi 0, %s94
      %s96 = sphi 0, %s94
      %s97 = sphi 0, %s96
      %s111 = sphi 0, %s97
      %s115 = sphi 0, %s115
      %s117 = sphi 0, %s115
      %s118 = sphi 0, %s117
      %s132 = sphi 0, %s118
      %s136 = sphi 0, %s136
      %s138 = sphi 0, %s136
      %s139 = sphi 0, %s138
      %s153 = sphi 0, %s139
      %s157 = sphi 0, %s157
      %s159 = sphi 0, %s157
      %s160 = sphi 0, %s159
      %s174 = sphi 0, %s160
      %s180 = sphi 0, %s182
      %s183 = sphi 0, %s180
      %s184 = sphi 0, %s183
      %s200 = sphi 0, %s184
    $region4: #{tpu_custom_call.1} parent=1 // loop_header_branch
      %21 = sbr.rel (%p19) target = $region8
    $region5: #{tpu_custom_call.1} parent=1 // loop_body
      %s23 = ssub.s32 %s18, 1
      %s24 = ssub.s32 %s18, 2
      %s25 = sadd.s32 %s18, 1
      %s26 = ssub.s32 %s18, %s25
      %p27 = scmp.eq.s32.totalorder %s26, 0
      %s29 = sadd.s32 %s28, 1
      %s30 = scalar_select %p27, %s28, %s29
      %p33 = pneg %p27
      %p34 = scmp.eq.s32.totalorder %s18, 2
      %p35 = por %p33, %p34
      %p36 = scmp.ne.s32.totalorder %s28, %s31
      %p37 = scmp.eq.s32.totalorder %s18, 0
      %p38 = por %p36, %p37
      %p39 = scmp.ne.s32.totalorder %s28, %s31
      %p40 = scmp.eq.s32.totalorder %s23, 2
      %p41 = por %p39, %p40
      %p42 = scmp.ne.s32.totalorder %s31, %s32
      %p43 = scmp.eq.s32.totalorder %s23, 0
      %p44 = por %p42, %p43
      %p45 = scmp.ne.s32.totalorder %s31, %s32
      %p46 = scmp.eq.s32.totalorder %s24, 2
      %p47 = por %p45, %p46
      %p49 = scmp.ne.s32.totalorder %s32, %s48
      %p50 = scmp.eq.s32.totalorder %s24, 0
      %p51 = por %p49, %p50
      %s53 = sadd.s32 %s52, 1
      %p56 = scmp.eq.s32.totalorder %s18, 2
      %p57 = scmp.ne.s32.totalorder %s52, %s54
      %p58 = scmp.eq.s32.totalorder %s18, 0
      %p59 = por %p57, %p58
      %p60 = scmp.ne.s32.totalorder %s52, %s54
      %p61 = scmp.eq.s32.totalorder %s23, 2
      %p62 = por %p60, %p61
      %p63 = scmp.ne.s32.totalorder %s54, %s55
      %p64 = scmp.eq.s32.totalorder %s23, 0
      %p65 = por %p63, %p64
      %p66 = scmp.ne.s32.totalorder %s54, %s55
      %p67 = scmp.eq.s32.totalorder %s24, 2
      %p68 = por %p66, %p67
      %p70 = scmp.ne.s32.totalorder %s55, %s69
      %p71 = scmp.eq.s32.totalorder %s24, 0
      %p72 = por %p70, %p71
      %s74 = sadd.s32 %s73, 1
      %p77 = scmp.eq.s32.totalorder %s18, 2
      %p78 = scmp.ne.s32.totalorder %s73, %s75
      %p79 = scmp.eq.s32.totalorder %s18, 0
      %p80 = por %p78, %p79
      %p81 = scmp.ne.s32.totalorder %s73, %s75
      %p82 = scmp.eq.s32.totalorder %s23, 2
      %p83 = por %p81, %p82
      %p84 = scmp.ne.s32.totalorder %s75, %s76
      %p85 = scmp.eq.s32.totalorder %s23, 0
      %p86 = por %p84, %p85
      %p87 = scmp.ne.s32.totalorder %s75, %s76
      %p88 = scmp.eq.s32.totalorder %s24, 2
      %p89 = por %p87, %p88
      %p91 = scmp.ne.s32.totalorder %s76, %s90
      %p92 = scmp.eq.s32.totalorder %s24, 0
      %p93 = por %p91, %p92
      %s95 = sadd.s32 %s94, 1
      %p98 = scmp.eq.s32.totalorder %s18, 2
      %p99 = scmp.ne.s32.totalorder %s94, %s96
      %p100 = scmp.eq.s32.totalorder %s18, 0
      %p101 = por %p99, %p100
      %p102 = scmp.ne.s32.totalorder %s94, %s96
      %p103 = scmp.eq.s32.totalorder %s23, 2
      %p104 = por %p102, %p103
      %p105 = scmp.ne.s32.totalorder %s96, %s97
      %p106 = scmp.eq.s32.totalorder %s23, 0
      %p107 = por %p105, %p106
      %p108 = scmp.ne.s32.totalorder %s96, %s97
      %p109 = scmp.eq.s32.totalorder %s24, 2
      %p110 = por %p108, %p109
      %p112 = scmp.ne.s32.totalorder %s97, %s111
      %p113 = scmp.eq.s32.totalorder %s24, 0
      %p114 = por %p112, %p113
      %s116 = sadd.s32 %s115, 1
      %p119 = scmp.eq.s32.totalorder %s18, 2
      %p120 = scmp.ne.s32.totalorder %s115, %s117
      %p121 = scmp.eq.s32.totalorder %s18, 0
      %p122 = por %p120, %p121
      %p123 = scmp.ne.s32.totalorder %s115, %s117
      %p124 = scmp.eq.s32.totalorder %s23, 2
      %p125 = por %p123, %p124
      %p126 = scmp.ne.s32.totalorder %s117, %s118
      %p127 = scmp.eq.s32.totalorder %s23, 0
      %p128 = por %p126, %p127
      %p129 = scmp.ne.s32.totalorder %s117, %s118
      %p130 = scmp.eq.s32.totalorder %s24, 2
      %p131 = por %p129, %p130
      %p133 = scmp.ne.s32.totalorder %s118, %s132
      %p134 = scmp.eq.s32.totalorder %s24, 0
      %p135 = por %p133, %p134
      %s137 = sadd.s32 %s136, 1
      %p140 = scmp.eq.s32.totalorder %s18, 2
      %p141 = scmp.ne.s32.totalorder %s136, %s138
      %p142 = scmp.eq.s32.totalorder %s18, 0
      %p143 = por %p141, %p142
      %p144 = scmp.ne.s32.totalorder %s136, %s138
      %p145 = scmp.eq.s32.totalorder %s23, 2
      %p146 = por %p144, %p145
      %p147 = scmp.ne.s32.totalorder %s138, %s139
      %p148 = scmp.eq.s32.totalorder %s23, 0
      %p149 = por %p147, %p148
      %p150 = scmp.ne.s32.totalorder %s138, %s139
      %p151 = scmp.eq.s32.totalorder %s24, 2
      %p152 = por %p150, %p151
      %p154 = scmp.ne.s32.totalorder %s139, %s153
      %p155 = scmp.eq.s32.totalorder %s24, 0
      %p156 = por %p154, %p155
      %s158 = sadd.s32 %s157, 1
      %p161 = scmp.eq.s32.totalorder %s18, 2
      %p162 = scmp.ne.s32.totalorder %s157, %s159
      %p163 = scmp.eq.s32.totalorder %s18, 0
      %p164 = por %p162, %p163
      %p165 = scmp.ne.s32.totalorder %s157, %s159
      %p166 = scmp.eq.s32.totalorder %s23, 2
      %p167 = por %p165, %p166
      %p168 = scmp.ne.s32.totalorder %s159, %s160
      %p169 = scmp.eq.s32.totalorder %s23, 0
      %p170 = por %p168, %p169
      %p171 = scmp.ne.s32.totalorder %s159, %s160
      %p172 = scmp.eq.s32.totalorder %s24, 2
      %p173 = por %p171, %p172
      %p175 = scmp.ne.s32.totalorder %s160, %s174
      %p176 = scmp.eq.s32.totalorder %s24, 0
      %p177 = por %p175, %p176
      %s178 = ssub.s32 %s18, %s25
      %p179 = scmp.eq.s32.totalorder %s178, 0
      %s181 = sadd.s32 %s180, 1
      %s182 = scalar_select %p179, %s180, %s181
      %p185 = pneg %p179
      %p186 = scmp.eq.s32.totalorder %s18, 2
      %p187 = por %p185, %p186
      %p188 = scmp.ne.s32.totalorder %s180, %s183
      %p189 = scmp.eq.s32.totalorder %s18, 0
      %p190 = por %p188, %p189
      %p191 = scmp.ne.s32.totalorder %s180, %s183
      %p192 = scmp.eq.s32.totalorder %s23, 2
      %p193 = por %p191, %p192
      %p194 = scmp.ne.s32.totalorder %s183, %s184
      %p195 = scmp.eq.s32.totalorder %s23, 0
      %p196 = por %p194, %p195
      %p197 = scmp.ne.s32.totalorder %s183, %s184
      %p198 = scmp.eq.s32.totalorder %s24, 2
      %p199 = por %p197, %p198
      %p201 = scmp.ne.s32.totalorder %s184, %s200
      %p202 = scmp.eq.s32.totalorder %s24, 0
      %p203 = por %p201, %p202
      %p204 = scmp.le.s32.totalorder 1, %s18
      %p205 = scmp.lt.s32.totalorder %s18, 4
      %p206 = pnand %p204, %p205
      %p207 = pneg %p206
      // Predicated region
      $region9: #{tpu_custom_call.1} parent=5 // pred_check
        _
      $region10: #{tpu_custom_call.1} parent=5 // pred_check_branch
        %209 = sbr.rel (%p206) target = $region12
      $region11: #{tpu_custom_call.1} parent=5 // pred_region
        %s210 = ssub.s32 %s18, 1
        // Predicated region
        $region13: #{tpu_custom_call.1} parent=11 // pred_check
          %p211 = pneg %p65
        $region14: #{tpu_custom_call.1} parent=11 // pred_check_branch
          %213 = sbr.rel (%p211) target = $region16
        $region15: #{tpu_custom_call.1} parent=11 // pred_region
          _
        $region16: #{tpu_custom_call.1} parent=11 // pred_fallthru
          _
        // Predicated region
        $region17: #{tpu_custom_call.1} parent=11 // pred_check
          %p214 = pneg %p86
        $region18: #{tpu_custom_call.1} parent=11 // pred_check_branch
          %216 = sbr.rel (%p214) target = $region20
        $region19: #{tpu_custom_call.1} parent=11 // pred_region
          _
        $region20: #{tpu_custom_call.1} parent=11 // pred_fallthru
          _
        // Predicated region
        $region21: #{tpu_custom_call.1} parent=11 // pred_check
          %p217 = pneg %p107
        $region22: #{tpu_custom_call.1} parent=11 // pred_check_branch
          %219 = sbr.rel (%p217) target = $region24
        $region23: #{tpu_custom_call.1} parent=11 // pred_region
          %s221 = ssub.s32 4096, 4096
          %222 = vsyncadd [#allocation3], %s221
          %s223 = sshll.u32 [#allocation2], 4
          %s224 = int_to_ptr.vmem [resolvable:$true] %s223
          %229 = dma.hbm_to_vmem [thread:$0]  %s3, 4096, %s224, [#allocation3], 128, 128, 8
        $region24: #{tpu_custom_call.1} parent=11 // pred_fallthru
          _
        // Predicated region
        $region25: #{tpu_custom_call.1} parent=11 // pred_check
          %p230 = pneg %p128
        $region26: #{tpu_custom_call.1} parent=11 // pred_check_branch
          %232 = sbr.rel (%p230) target = $region28
        $region27: #{tpu_custom_call.1} parent=11 // pred_region
          _
        $region28: #{tpu_custom_call.1} parent=11 // pred_fallthru
          _
        // Predicated region
        $region29: #{tpu_custom_call.1} parent=11 // pred_check
          %p233 = pneg %p149
        $region30: #{tpu_custom_call.1} parent=11 // pred_check_branch
          %235 = sbr.rel (%p233) target = $region32
        $region31: #{tpu_custom_call.1} parent=11 // pred_region
          %s237 = ssub.s32 2048, 2048
          %238 = vsyncadd [#allocation6], %s237
          %s239 = sshll.u32 [#allocation5], 4
          %s240 = int_to_ptr.vmem [resolvable:$true] %s239
          %245 = dma.hbm_to_vmem [thread:$0]  %s5, 2048, %s240, [#allocation6], 64, 64, 4
        $region32: #{tpu_custom_call.1} parent=11 // pred_fallthru
          _
        // Predicated region
        $region33: #{tpu_custom_call.1} parent=11 // pred_check
          %p246 = pneg %p170
        $region34: #{tpu_custom_call.1} parent=11 // pred_check_branch
          %248 = sbr.rel (%p246) target = $region36
        $region35: #{tpu_custom_call.1} parent=11 // pred_region
          _
        $region36: #{tpu_custom_call.1} parent=11 // pred_fallthru
          _
      $region12: #{tpu_custom_call.1} parent=5 // pred_fallthru
        _
      %p249 = scmp.lt.s32.totalorder %s18, 3
      // Predicated region
      $region37: #{tpu_custom_call.1} parent=5 // pred_check
        %p250 = pneg %p249
      $region38: #{tpu_custom_call.1} parent=5 // pred_check_branch
        %252 = sbr.rel (%p250) target = $region40
      $region39: #{tpu_custom_call.1} parent=5 // pred_region
        // Predicated region
        $region41: #{tpu_custom_call.1} parent=39 // pred_check
          %p253 = pneg %p38
        $region42: #{tpu_custom_call.1} parent=39 // pred_check_branch
          %255 = sbr.rel (%p253) target = $region44
        $region43: #{tpu_custom_call.1} parent=39 // pred_region
          %s256 = smul.u32 2, %s18
          %p257 = scmp.lt.s32.totalorder %s256, 5
          %s258 = scalar_select %p257, %s256, 5
          %s259 = smul.addr %s258, 8
          %s260 = scalar_lea.vmem %s0, %s259
          %s261 = smul.u32 2, %s18
        $region44: #{tpu_custom_call.1} parent=39 // pred_fallthru
          _
      $region40: #{tpu_custom_call.1} parent=5 // pred_fallthru
        _
      %p262 = scmp.le.s32.totalorder 1, %s18
      %p263 = scmp.lt.s32.totalorder %s18, 4
      %p264 = pnand %p262, %p263
      %p265 = pneg %p264
      // Predicated region
      $region45: #{tpu_custom_call.1} parent=5 // pred_check
        _
      $region46: #{tpu_custom_call.1} parent=5 // pred_check_branch
        %267 = sbr.rel (%p264) target = $region48
      $region47: #{tpu_custom_call.1} parent=5 // pred_region
        %s268 = ssub.s32 %s18, 1
        // Predicated region
        $region49: #{tpu_custom_call.1} parent=47 // pred_check
          %p269 = pneg %p107
        $region50: #{tpu_custom_call.1} parent=47 // pred_check_branch
          %271 = sbr.rel (%p269) target = $region52
        $region51: #{tpu_custom_call.1} parent=47 // pred_region
          %272 = dma.done [#allocation3], 4096
        $region52: #{tpu_custom_call.1} parent=47 // pred_fallthru
          _
        // Predicated region
        $region53: #{tpu_custom_call.1} parent=47 // pred_check
          %p273 = pneg %p149
        $region54: #{tpu_custom_call.1} parent=47 // pred_check_branch
          %275 = sbr.rel (%p273) target = $region56
        $region55: #{tpu_custom_call.1} parent=47 // pred_region
          %276 = dma.done [#allocation6], 2048
        $region56: #{tpu_custom_call.1} parent=47 // pred_fallthru
          _
        %s277 = smul.u32 2, %s23
        %p278 = scmp.lt.s32.totalorder %s277, 5
        %s279 = scalar_select %p278, %s277, 5
        %s280 = smul.addr %s279, 8
        %s281 = scalar_lea.vmem %s0, %s280
        %p282 = pneg %p44
        %p283 = pneg %p41
        %p284 = pneg %p65
        %p285 = pneg %p62
        %p286 = pneg %p86
        %p287 = pneg %p83
        %p288 = pneg %p107
        %p289 = pneg %p104
        %p290 = pneg %p128
        %p291 = pneg %p125
        %p292 = pneg %p149
        %p293 = pneg %p146
        %p294 = pneg %p170
        %p295 = pneg %p167
        %p296 = pneg %p196
        %p297 = pneg %p193
        %s298 = sand.u32 %s183, 1
        %s299 = scalar_lea.sflag [#allocation4], %s298
        %s300 = sand.u32 %s183, 1
        %s301 = smul.addr %s300, 16
        %s302 = scalar_lea.vmem [#allocation7], %s301
        %s303 = smul.u32 2, %s23
        %p304 = scmp.lt.s32.totalorder %s303, 5
        %s305 = scalar_select %p304, %s303, 5
        %s306 = smul.addr %s305, 8
        %s307 = scalar_lea.vmem %s0, %s306
        %s308 = smul.u32 2, %s23
        %s309 = smul.u32 2, %s23
        %v311 = vld [vmem:[%s307] sm:$0xff]
        %v312 = vld [vmem:[%s307 + $0x8] sm:$0xff]
        %v313 = vpack.c.bf16 %v312, %v311
        %v314 = vld [vmem:[%s1] sm:$0xff]
        %v315 = vld [vmem:[%s1 + $0x8] sm:$0xff]
        %v316 = vld [vmem:[%s2] sm:$0x3]
        %v318 = vlaneseq
        %v319 = vshrl.u32 %v318, 7
        %v320 = vsub.s32 0, %v319
        %v321 = vrot.slane %v316, %v320
        %v322 = vlaneseq
        %v323 = vshrl.u32 %v322, 7
        %v324 = vsub.s32 1, %v323
        %v325 = vrot.slane %v316, %v324
        %v330 = vunpack.c.l.b16 %v314
        %v331 = vunpack.c.h.b16 %v314
        %v332 = vunpack.c.l.b16 %v315
        %v333 = vunpack.c.h.b16 %v315
        %v334 = vpack.c.b16 %v332, %v330
        %v335 = vpack.c.b16 %v333, %v331
        %vm338 = vcmask 130048
        %v340 = vsel %vm338, %v313, 0
        %342 = vmatprep.subr.bf16.mxu0 0
        %343 = vmatpush1.bf16.msra.mxu0 0
        %344 = vmatprep.subr.bf16.mxu0 0
        %345 = vmatpush1.bf16.msra.mxu0 0
        %346 = vmatprep.subr.bf16.mxu0 0
        %347 = vmatpush1.bf16.msra.mxu0 0
        %348 = vmatprep.subr.bf16.mxu0 0
        %349 = vmatpush1.bf16.msra.mxu0 0
        %350 = vmatprep.subr.bf16.mxu0 0
        %351 = vmatpush1.bf16.msra.mxu0 0
        %352 = vmatprep.subr.bf16.mxu0 0
        %353 = vmatpush1.bf16.msra.mxu0 0
        %354 = vmatprep.subr.bf16.mxu0 0
        %355 = vmatpush1.bf16.msra.mxu0 0
        %356 = vmatprep.subr.bf16.mxu0 %v335
        %357 = vmatpush1.bf16.msra.mxu0 %v334
        %358 = vmatprep.subr.bf16.mxu0 0
        %359 = vmatpush2.bf16.msra.mxu0 0
        %360 = vmatprep.subr.bf16.mxu0 0
        %361 = vmatpush2.bf16.msra.mxu0 0
        %362 = vmatprep.subr.bf16.mxu0 0
        %363 = vmatpush2.bf16.msra.mxu0 0
        %364 = vmatprep.subr.bf16.mxu0 0
        %365 = vmatpush2.bf16.msra.mxu0 0
        %366 = vmatprep.subr.bf16.mxu0 0
        %367 = vmatpush2.bf16.msra.mxu0 0
        %368 = vmatprep.subr.bf16.mxu0 0
        %369 = vmatpush2.bf16.msra.mxu0 0
        %370 = vmatprep.subr.bf16.mxu0 0
        %371 = vmatpush2.bf16.msra.mxu0 0
        %372 = vmatprep.subr.bf16.mxu0 0
        %373 = vmatpush2.bf16.msra.mxu0 0
        %374 = vmatprep.mubr.bf16.mxu0 0
        %375 = vmatmul.mubr.bf16.gmra.mxu0 %v340
        %v376 = vpop.f32.mrf.mxu0
        %v377 = vadd.f32 %v321, %v376
        %v378 = vpop.f32.mrf.mxu0
        %v379 = vadd.f32 %v325, %v378
        %v380 = vpop.f32.mrf.mxu0
        %v381 = vadd.f32 %v321, %v380
        %v382 = vpop.f32.mrf.mxu0
        %v383 = vadd.f32 %v325, %v382
        %384 = vdwg.mxu0
        %v385 = vmax.f32 %v377, 0.0
        %v386 = vmax.f32 %v379, 0.0
        %v387 = vmax.f32 %v381, 0.0
        %v388 = vmax.f32 %v383, 0.0
        %v389 = vpack.c.bf16 %v387, %v385
        %v390 = vpack.c.bf16 %v388, %v386
        %v391 = vld [vmem:[#allocation2] sm:$0xff]
        %v392 = vld [vmem:[#allocation2 + $0x8] sm:$0xff]
        %v393 = vld [vmem:[#allocation2 + $0x10] sm:$0xff]
        %v394 = vld [vmem:[#allocation2 + $0x18] sm:$0xff]
        %v395 = vld [vmem:[#allocation2 + $0x20] sm:$0xff]
        %v396 = vld [vmem:[#allocation2 + $0x28] sm:$0xff]
        %v397 = vld [vmem:[#allocation2 + $0x30] sm:$0xff]
        %v398 = vld [vmem:[#allocation2 + $0x38] sm:$0xff]
        %v399 = vld [vmem:[#allocation2 + $0x40] sm:$0xff]
        %v400 = vld [vmem:[#allocation2 + $0x48] sm:$0xff]
        %v401 = vld [vmem:[#allocation2 + $0x50] sm:$0xff]
        %v402 = vld [vmem:[#allocation2 + $0x58] sm:$0xff]
        %v403 = vld [vmem:[#allocation2 + $0x60] sm:$0xff]
        %v404 = vld [vmem:[#allocation2 + $0x68] sm:$0xff]
        %v405 = vld [vmem:[#allocation2 + $0x70] sm:$0xff]
        %v406 = vld [vmem:[#allocation2 + $0x78] sm:$0xff]
        %v407 = vld [vmem:[#allocation2 + $0x80] sm:$0xff]
        %v408 = vld [vmem:[#allocation2 + $0x88] sm:$0xff]
        %v409 = vld [vmem:[#allocation2 + $0x90] sm:$0xff]
        %v410 = vld [vmem:[#allocation2 + $0x98] sm:$0xff]
        %v411 = vld [vmem:[#allocation2 + $0xa0] sm:$0xff]
        %v412 = vld [vmem:[#allocation2 + $0xa8] sm:$0xff]
        %v413 = vld [vmem:[#allocation2 + $0xb0] sm:$0xff]
        %v414 = vld [vmem:[#allocation2 + $0xb8] sm:$0xff]
        %v415 = vld [vmem:[#allocation2 + $0xc0] sm:$0xff]
        %v416 = vld [vmem:[#allocation2 + $0xc8] sm:$0xff]
        %v417 = vld [vmem:[#allocation2 + $0xd0] sm:$0xff]
        %v418 = vld [vmem:[#allocation2 + $0xd8] sm:$0xff]
        %v419 = vld [vmem:[#allocation2 + $0xe0] sm:$0xff]
        %v420 = vld [vmem:[#allocation2 + $0xe8] sm:$0xff]
        %v421 = vld [vmem:[#allocation2 + $0xf0] sm:$0xff]
        %v422 = vld [vmem:[#allocation2 + $0xf8] sm:$0xff]
        %v423 = vld [vmem:[%s4] sm:$0x3]
        %v425 = vlaneseq
        %v426 = vshrl.u32 %v425, 7
        %v427 = vsub.s32 0, %v426
        %v428 = vrot.slane %v423, %v427
        %v429 = vlaneseq
        %v430 = vshrl.u32 %v429, 7
        %v431 = vsub.s32 1, %v430
        %v432 = vrot.slane %v423, %v431
        %v467 = vunpack.c.l.b16 %v391
        %v468 = vunpack.c.h.b16 %v391
        %v469 = vunpack.c.l.b16 %v392
        %v470 = vunpack.c.h.b16 %v392
        %v471 = vunpack.c.l.b16 %v393
        %v472 = vunpack.c.h.b16 %v393
        %v473 = vunpack.c.l.b16 %v394
        %v474 = vunpack.c.h.b16 %v394
        %v475 = vunpack.c.l.b16 %v395
        %v476 = vunpack.c.h.b16 %v395
        %v477 = vunpack.c.l.b16 %v396
        %v478 = vunpack.c.h.b16 %v396
        %v479 = vunpack.c.l.b16 %v397
        %v480 = vunpack.c.h.b16 %v397
        %v481 = vunpack.c.l.b16 %v398
        %v482 = vunpack.c.h.b16 %v398
        %v483 = vunpack.c.l.b16 %v399
        %v484 = vunpack.c.h.b16 %v399
        %v485 = vunpack.c.l.b16 %v400
        %v486 = vunpack.c.h.b16 %v400
        %v487 = vunpack.c.l.b16 %v401
        %v488 = vunpack.c.h.b16 %v401
        %v489 = vunpack.c.l.b16 %v402
        %v490 = vunpack.c.h.b16 %v402
        %v491 = vunpack.c.l.b16 %v403
        %v492 = vunpack.c.h.b16 %v403
        %v493 = vunpack.c.l.b16 %v404
        %v494 = vunpack.c.h.b16 %v404
        %v495 = vunpack.c.l.b16 %v405
        %v496 = vunpack.c.h.b16 %v405
        %v497 = vunpack.c.l.b16 %v406
        %v498 = vunpack.c.h.b16 %v406
        %v499 = vunpack.c.l.b16 %v407
        %v500 = vunpack.c.h.b16 %v407
        %v501 = vunpack.c.l.b16 %v408
        %v502 = vunpack.c.h.b16 %v408
        %v503 = vunpack.c.l.b16 %v409
        %v504 = vunpack.c.h.b16 %v409
        %v505 = vunpack.c.l.b16 %v410
        %v506 = vunpack.c.h.b16 %v410
        %v507 = vunpack.c.l.b16 %v411
        %v508 = vunpack.c.h.b16 %v411
        %v509 = vunpack.c.l.b16 %v412
        %v510 = vunpack.c.h.b16 %v412
        %v511 = vunpack.c.l.b16 %v413
        %v512 = vunpack.c.h.b16 %v413
        %v513 = vunpack.c.l.b16 %v414
        %v514 = vunpack.c.h.b16 %v414
        %v515 = vunpack.c.l.b16 %v415
        %v516 = vunpack.c.h.b16 %v415
        %v517 = vunpack.c.l.b16 %v416
        %v518 = vunpack.c.h.b16 %v416
        %v519 = vunpack.c.l.b16 %v417
        %v520 = vunpack.c.h.b16 %v417
        %v521 = vunpack.c.l.b16 %v418
        %v522 = vunpack.c.h.b16 %v418
        %v523 = vunpack.c.l.b16 %v419
        %v524 = vunpack.c.h.b16 %v419
        %v525 = vunpack.c.l.b16 %v420
        %v526 = vunpack.c.h.b16 %v420
        %v527 = vunpack.c.l.b16 %v421
        %v528 = vunpack.c.h.b16 %v421
        %v529 = vunpack.c.l.b16 %v422
        %v530 = vunpack.c.h.b16 %v422
        %v531 = vpack.c.b16 %v469, %v467
        %v532 = vpack.c.b16 %v470, %v468
        %v533 = vpack.c.b16 %v473, %v471
        %v534 = vpack.c.b16 %v474, %v472
        %v535 = vpack.c.b16 %v477, %v475
        %v536 = vpack.c.b16 %v478, %v476
        %v537 = vpack.c.b16 %v481, %v479
        %v538 = vpack.c.b16 %v482, %v480
        %v539 = vpack.c.b16 %v485, %v483
        %v540 = vpack.c.b16 %v486, %v484
        %v541 = vpack.c.b16 %v489, %v487
        %v542 = vpack.c.b16 %v490, %v488
        %v543 = vpack.c.b16 %v493, %v491
        %v544 = vpack.c.b16 %v494, %v492
        %v545 = vpack.c.b16 %v497, %v495
        %v546 = vpack.c.b16 %v498, %v496
        %v547 = vpack.c.b16 %v501, %v499
        %v548 = vpack.c.b16 %v502, %v500
        %v549 = vpack.c.b16 %v505, %v503
        %v550 = vpack.c.b16 %v506, %v504
        %v551 = vpack.c.b16 %v509, %v507
        %v552 = vpack.c.b16 %v510, %v508
        %v553 = vpack.c.b16 %v513, %v511
        %v554 = vpack.c.b16 %v514, %v512
        %v555 = vpack.c.b16 %v517, %v515
        %v556 = vpack.c.b16 %v518, %v516
        %v557 = vpack.c.b16 %v521, %v519
        %v558 = vpack.c.b16 %v522, %v520
        %v559 = vpack.c.b16 %v525, %v523
        %v560 = vpack.c.b16 %v526, %v524
        %v561 = vpack.c.b16 %v529, %v527
        %v562 = vpack.c.b16 %v530, %v528
        %595 = vmatprep.subr.bf16.mxu0 %v546
        %596 = vmatpush1.bf16.msra.mxu0 %v545
        %597 = vmatprep.subr.bf16.mxu0 %v544
        %598 = vmatpush1.bf16.msra.mxu0 %v543
        %599 = vmatprep.subr.bf16.mxu0 %v542
        %600 = vmatpush1.bf16.msra.mxu0 %v541
        %601 = vmatprep.subr.bf16.mxu0 %v540
        %602 = vmatpush1.bf16.msra.mxu0 %v539
        %603 = vmatprep.subr.bf16.mxu0 %v538
        %604 = vmatpush1.bf16.msra.mxu0 %v537
        %605 = vmatprep.subr.bf16.mxu0 %v536
        %606 = vmatpush1.bf16.msra.mxu0 %v535
        %607 = vmatprep.subr.bf16.mxu0 %v534
        %608 = vmatpush1.bf16.msra.mxu0 %v533
        %609 = vmatprep.subr.bf16.mxu0 %v532
        %610 = vmatpush1.bf16.msra.mxu0 %v531
        %611 = vmatprep.subr.bf16.mxu0 %v562
        %612 = vmatpush2.bf16.msra.mxu0 %v561
        %613 = vmatprep.subr.bf16.mxu0 %v560
        %614 = vmatpush2.bf16.msra.mxu0 %v559
        %615 = vmatprep.subr.bf16.mxu0 %v558
        %616 = vmatpush2.bf16.msra.mxu0 %v557
        %617 = vmatprep.subr.bf16.mxu0 %v556
        %618 = vmatpush2.bf16.msra.mxu0 %v555
        %619 = vmatprep.subr.bf16.mxu0 %v554
        %620 = vmatpush2.bf16.msra.mxu0 %v553
        %621 = vmatprep.subr.bf16.mxu0 %v552
        %622 = vmatpush2.bf16.msra.mxu0 %v551
        %623 = vmatprep.subr.bf16.mxu0 %v550
        %624 = vmatpush2.bf16.msra.mxu0 %v549
        %625 = vmatprep.subr.bf16.mxu0 %v548
        %626 = vmatpush2.bf16.msra.mxu0 %v547
        %627 = vmatprep.mubr.bf16.mxu0 %v390
        %628 = vmatmul.mubr.bf16.gmra.mxu0 %v389
        %v629 = vpop.f32.mrf.mxu0
        %v630 = vadd.f32 %v428, %v629
        %v631 = vpop.f32.mrf.mxu0
        %v632 = vadd.f32 %v432, %v631
        %v633 = vpop.f32.mrf.mxu0
        %v634 = vadd.f32 %v428, %v633
        %v635 = vpop.f32.mrf.mxu0
        %v636 = vadd.f32 %v432, %v635
        %637 = vdwg.mxu0
        %v638 = vmax.f32 %v630, 0.0
        %v639 = vmax.f32 %v632, 0.0
        %v640 = vmax.f32 %v634, 0.0
        %v641 = vmax.f32 %v636, 0.0
        %v642 = vpack.c.bf16 %v640, %v638
        %v643 = vpack.c.bf16 %v641, %v639
        %v644 = vld [vmem:[#allocation5] sm:$0xf]
        %v645 = vld [vmem:[#allocation5 + $0x4] sm:$0xf]
        %v646 = vld [vmem:[#allocation5 + $0x8] sm:$0xf]
        %v647 = vld [vmem:[#allocation5 + $0xc] sm:$0xf]
        %v648 = vld [vmem:[#allocation5 + $0x10] sm:$0xf]
        %v649 = vld [vmem:[#allocation5 + $0x14] sm:$0xf]
        %v650 = vld [vmem:[#allocation5 + $0x18] sm:$0xf]
        %v651 = vld [vmem:[#allocation5 + $0x1c] sm:$0xf]
        %v652 = vld [vmem:[#allocation5 + $0x20] sm:$0xf]
        %v653 = vld [vmem:[#allocation5 + $0x24] sm:$0xf]
        %v654 = vld [vmem:[#allocation5 + $0x28] sm:$0xf]
        %v655 = vld [vmem:[#allocation5 + $0x2c] sm:$0xf]
        %v656 = vld [vmem:[#allocation5 + $0x30] sm:$0xf]
        %v657 = vld [vmem:[#allocation5 + $0x34] sm:$0xf]
        %v658 = vld [vmem:[#allocation5 + $0x38] sm:$0xf]
        %v659 = vld [vmem:[#allocation5 + $0x3c] sm:$0xf]
        %v660 = vld [vmem:[#allocation5 + $0x40] sm:$0xf]
        %v661 = vld [vmem:[#allocation5 + $0x44] sm:$0xf]
        %v662 = vld [vmem:[#allocation5 + $0x48] sm:$0xf]
        %v663 = vld [vmem:[#allocation5 + $0x4c] sm:$0xf]
        %v664 = vld [vmem:[#allocation5 + $0x50] sm:$0xf]
        %v665 = vld [vmem:[#allocation5 + $0x54] sm:$0xf]
        %v666 = vld [vmem:[#allocation5 + $0x58] sm:$0xf]
        %v667 = vld [vmem:[#allocation5 + $0x5c] sm:$0xf]
        %v668 = vld [vmem:[#allocation5 + $0x60] sm:$0xf]
        %v669 = vld [vmem:[#allocation5 + $0x64] sm:$0xf]
        %v670 = vld [vmem:[#allocation5 + $0x68] sm:$0xf]
        %v671 = vld [vmem:[#allocation5 + $0x6c] sm:$0xf]
        %v672 = vld [vmem:[#allocation5 + $0x70] sm:$0xf]
        %v673 = vld [vmem:[#allocation5 + $0x74] sm:$0xf]
        %v674 = vld [vmem:[#allocation5 + $0x78] sm:$0xf]
        %v675 = vld [vmem:[#allocation5 + $0x7c] sm:$0xf]
        %v676 = vld [vmem:[%s6] sm:$0x1]
        %v678 = vlaneseq
        %v679 = vshrl.u32 %v678, 7
        %v680 = vsub.s32 0, %v679
        %v681 = vrot.slane %v676, %v680
        %v715 = vunpack.c.l.b16 %v644
        %v716 = vunpack.c.l.b16 %v645
        %v717 = vunpack.c.l.b16 %v646
        %v718 = vunpack.c.l.b16 %v647
        %v719 = vunpack.c.l.b16 %v648
        %v720 = vunpack.c.l.b16 %v649
        %v721 = vunpack.c.l.b16 %v650
        %v722 = vunpack.c.l.b16 %v651
        %v723 = vunpack.c.l.b16 %v652
        %v724 = vunpack.c.l.b16 %v653
        %v725 = vunpack.c.l.b16 %v654
        %v726 = vunpack.c.l.b16 %v655
        %v727 = vunpack.c.l.b16 %v656
        %v728 = vunpack.c.l.b16 %v657
        %v729 = vunpack.c.l.b16 %v658
        %v730 = vunpack.c.l.b16 %v659
        %v731 = vunpack.c.l.b16 %v660
        %v732 = vunpack.c.l.b16 %v661
        %v733 = vunpack.c.l.b16 %v662
        %v734 = vunpack.c.l.b16 %v663
        %v735 = vunpack.c.l.b16 %v664
        %v736 = vunpack.c.l.b16 %v665
        %v737 = vunpack.c.l.b16 %v666
        %v738 = vunpack.c.l.b16 %v667
        %v739 = vunpack.c.l.b16 %v668
        %v740 = vunpack.c.l.b16 %v669
        %v741 = vunpack.c.l.b16 %v670
        %v742 = vunpack.c.l.b16 %v671
        %v743 = vunpack.c.l.b16 %v672
        %v744 = vunpack.c.l.b16 %v673
        %v745 = vunpack.c.l.b16 %v674
        %v746 = vunpack.c.l.b16 %v675
        %v747 = vpack.c.b16 %v716, %v715
        %v748 = vpack.c.b16 %v718, %v717
        %v749 = vpack.c.b16 %v720, %v719
        %v750 = vpack.c.b16 %v722, %v721
        %v751 = vpack.c.b16 %v724, %v723
        %v752 = vpack.c.b16 %v726, %v725
        %v753 = vpack.c.b16 %v728, %v727
        %v754 = vpack.c.b16 %v730, %v729
        %v755 = vpack.c.b16 %v732, %v731
        %v756 = vpack.c.b16 %v734, %v733
        %v757 = vpack.c.b16 %v736, %v735
        %v758 = vpack.c.b16 %v738, %v737
        %v759 = vpack.c.b16 %v740, %v739
        %v760 = vpack.c.b16 %v742, %v741
        %v761 = vpack.c.b16 %v744, %v743
        %v762 = vpack.c.b16 %v746, %v745
        %779 = vmatprep.subr.bf16.mxu0 0
        %780 = vmatpush1.bf16.msra.mxu0 %v754
        %781 = vmatprep.subr.bf16.mxu0 0
        %782 = vmatpush1.bf16.msra.mxu0 %v753
        %783 = vmatprep.subr.bf16.mxu0 0
        %784 = vmatpush1.bf16.msra.mxu0 %v752
        %785 = vmatprep.subr.bf16.mxu0 0
        %786 = vmatpush1.bf16.msra.mxu0 %v751
        %787 = vmatprep.subr.bf16.mxu0 0
        %788 = vmatpush1.bf16.msra.mxu0 %v750
        %789 = vmatprep.subr.bf16.mxu0 0
        %790 = vmatpush1.bf16.msra.mxu0 %v749
        %791 = vmatprep.subr.bf16.mxu0 0
        %792 = vmatpush1.bf16.msra.mxu0 %v748
        %793 = vmatprep.subr.bf16.mxu0 0
        %794 = vmatpush1.bf16.msra.mxu0 %v747
        %795 = vmatprep.subr.bf16.mxu0 0
        %796 = vmatpush2.bf16.msra.mxu0 %v762
        %797 = vmatprep.subr.bf16.mxu0 0
        %798 = vmatpush2.bf16.msra.mxu0 %v761
        %799 = vmatprep.subr.bf16.mxu0 0
        %800 = vmatpush2.bf16.msra.mxu0 %v760
        %801 = vmatprep.subr.bf16.mxu0 0
        %802 = vmatpush2.bf16.msra.mxu0 %v759
        %803 = vmatprep.subr.bf16.mxu0 0
        %804 = vmatpush2.bf16.msra.mxu0 %v758
        %805 = vmatprep.subr.bf16.mxu0 0
        %806 = vmatpush2.bf16.msra.mxu0 %v757
        %807 = vmatprep.subr.bf16.mxu0 0
        %808 = vmatpush2.bf16.msra.mxu0 %v756
        %809 = vmatprep.subr.bf16.mxu0 0
        %810 = vmatpush2.bf16.msra.mxu0 %v755
        %811 = vmatprep.mubr.bf16.mxu0 %v643
        %812 = vmatmul.mubr.bf16.gmra.mxu0 %v642
        %v813 = vpop.f32.mrf.mxu0
        %v814 = vadd.f32 %v681, %v813
        %v815 = vpop.f32.mrf.mxu0
        %v816 = vpop.f32.mrf.mxu0
        %v817 = vadd.f32 %v681, %v816
        %v818 = vpop.f32.mrf.mxu0
        %819 = vdwg.mxu0
        %v820 = vtanh.pop %v814
        %v821 = vtanh.pop %v817
        %v822 = vmul.f32 %v820, 2.0
        %v823 = vmul.f32 %v821, 2.0
        %824 = vst [vmem:[%s302] sm:$0xff] %v822
        %825 = vst [vmem:[%s302 + $0x8] sm:$0xff] %v823
        %s826 = sand.u32 %s183, 1
        %s827 = scalar_lea.sflag [#allocation4], %s826
        %s828 = sand.u32 %s183, 1
        %s829 = smul.addr %s828, 16
        %s830 = scalar_lea.vmem [#allocation7], %s829
        // Predicated region
        $region57: #{tpu_custom_call.1} parent=47 // pred_check
          %p831 = pneg %p193
        $region58: #{tpu_custom_call.1} parent=47 // pred_check_branch
          %833 = sbr.rel (%p831) target = $region60
        $region59: #{tpu_custom_call.1} parent=47 // pred_region
          %s834 = smul.u32 2, %s23
          %s836 = ssub.s32 256, 256
          %837 = vsyncadd %s827, %s836
          %s838 = smul.addr %s834, 128
          %s839 = scalar_lea.hbm %s7, %s838
          %s840 = sshll.u32 %s830, 4
          %s841 = int_to_ptr.vmem [resolvable:$true] %s840
          %846 = dma.vmem_to_hbm [thread:$0]  %s841, 256, %s839, %s827, 128, 128, 8
        $region60: #{tpu_custom_call.1} parent=47 // pred_fallthru
          _
      $region48: #{tpu_custom_call.1} parent=5 // pred_fallthru
        _
      %p847 = scmp.le.s32.totalorder 2, %s18
      // Predicated region
      $region61: #{tpu_custom_call.1} parent=5 // pred_check
        %p848 = pneg %p847
      $region62: #{tpu_custom_call.1} parent=5 // pred_check_branch
        %850 = sbr.rel (%p848) target = $region64
      $region63: #{tpu_custom_call.1} parent=5 // pred_region
        %s851 = ssub.s32 %s18, 2
        // Predicated region
        $region65: #{tpu_custom_call.1} parent=63 // pred_check
          %p852 = pneg %p199
        $region66: #{tpu_custom_call.1} parent=63 // pred_check_branch
          %854 = sbr.rel (%p852) target = $region68
        $region67: #{tpu_custom_call.1} parent=63 // pred_region
          %s855 = sand.u32 %s184, 1
          %s856 = scalar_lea.sflag [#allocation4], %s855
          %s857 = sand.u32 %s184, 1
          %s858 = smul.addr %s857, 16
          %s859 = scalar_lea.vmem [#allocation7], %s858
          %860 = dma.done %s856, 256
        $region68: #{tpu_custom_call.1} parent=63 // pred_fallthru
          _
      $region64: #{tpu_custom_call.1} parent=5 // pred_fallthru
        _
    $region6: #{tpu_custom_call.1} parent=1 // loop_footer
      %s22 = sadd.s32 1, %s18
    $region7: #{tpu_custom_call.1} parent=1 // loop_footer_branch
      %17 = sbr.rel target = $region3
    $region8: #{tpu_custom_call.1} parent=1 // loop_exit
      _
    %861 = vsyncpa [#allocation3], 1
    %s862 = scalar_lea.sflag [#allocation3], 1
    %863 = vsyncpa %s862, 1
    %864 = vsyncpa [#allocation6], 1
    %865 = vsyncpa [#allocation4], 1
    %s866 = scalar_lea.sflag [#allocation4], 1
    %867 = vsyncpa %s866, 1

</llo_original>
